<compile_context>
chip_gen: v6e
topology: v6e:2x2x1
jax: 0.10.0
libtpu: 0.0.40
codegen_flags: <defaults>
</compile_context>

<pallas_src>
import numpy as np
import jax
import jax.numpy as jnp
from jax.experimental import pallas as pl
from jax.experimental.pallas import tpu as pltpu

_LANE = 128


# ----------------------------- Pallas kernel ------------------------------- #

def _ce_kernel(logits_ref, target_ref, out_ref):
    """Per-sample cross entropy (reduction='none'), numerically stable, for all
    M models at once.

    logits_ref: (M, C, TILE_N) native dtype (upcast to f32 in-tile)
    target_ref: (1, TILE_N) int32
    out_ref:    (M, TILE_N) f32
    """
    logits = logits_ref[...].astype(jnp.float32)                    # (M, C, T)
    tgt = target_ref[...]                                           # (1, T)
    cls = jax.lax.broadcasted_iota(jnp.int32, logits.shape, 1)      # class id / sublane
    m = jnp.max(logits, axis=1, keepdims=True)                      # (M, 1, T)
    lse = m + jnp.log(jnp.sum(jnp.exp(logits - m), axis=1, keepdims=True))
    # picked-logit without materializing a float one-hot (saves two VALU passes)
    picked = jnp.sum(jnp.where(cls == tgt[:, None, :], logits, 0.0),
                     axis=1, keepdims=True)                          # (M, 1, T)
    out_ref[...] = (lse - picked)[:, 0, :]                           # lane-dense store


# ------------------------------ wrappers ----------------------------------- #

def _round_up(x, m):
    return (x + m - 1) // m * m


def _vmem_capacity_bytes():
    # Generation-aware VMEM capacity (v5e/v6e: 128 MiB, v7x: 64 MiB).  Fall back
    # to the most conservative (v7x) figure if the query is unavailable.
    try:
        return int(pltpu.get_tpu_info().vmem_capacity_bytes)
    except Exception:
        return 64 * 1024 * 1024


def _choose_tile_n(M, N, C, itemsize):
    """Pick the batch-tile (lane) width and a matching scoped-VMEM limit.

    Budgets the *double-buffered* working set (2x logits + 2x target + 2x out)
    against ~1/3 of the generation's physical VMEM, keeps tiles lane-aligned,
    and keeps >=2 grid steps whenever N is large enough so v7x's megacore can
    shard the single parallel grid axis across both TensorCores.
    """
    per_lane = 2 * (M * C * itemsize + 4 + M * 4)       # bytes/lane, double-buffered
    cap = _vmem_capacity_bytes()
    budget = cap // 3
    if N <= 2 * _LANE:
        tile_n = N                                       # one full-extent tile
    else:
        tile_n = (budget // per_lane) // _LANE * _LANE
        tile_n = min(tile_n, 32 * 1024)                  # diminishing returns past ~32K lanes
        tile_n = min(tile_n, _round_up(pl.cdiv(N, 2), _LANE))  # >=2 steps for megacore
        # Floor at one lane-group.  If C is so large that even 128 lanes blow the
        # budget, the explicit vmem_limit below still covers it (up to 0.9*cap).
        # TODO(synk): for very large C, split the class axis onto an 'arbitrary'
        # grid dim with an online-softmax instead of raising the limit.
        tile_n = max(tile_n, _LANE)
    working_set = per_lane * tile_n
    # Explicit scoped-VMEM limit: covers the working set (plus in-kernel f32
    # temporaries) with headroom even on v5e's 16 MiB default, never above
    # ~0.9x the physical capacity (v7x = 64 MiB).
    vmem_limit = int(min(0.9 * cap, max(2 * working_set, 16 * 1024 * 1024)))
    return tile_n, vmem_limit


def per_sample_ce(logits_mcn, target):
    """logits_mcn: (M, C, N) float; target: (N,) int -> (M, N) f32 per-sample CE."""
    M, C, N = logits_mcn.shape
    tile_n, vmem_limit = _choose_tile_n(M, N, C, logits_mcn.dtype.itemsize)
    tgt2d = target.astype(jnp.int32).reshape(1, N)

    # No explicit padding of N: Pallas masks the partial last block.  The
    # overhang lanes of that block read unspecified logits/targets whose CE may
    # be inf/NaN, but those lanes are never written back to the (M, N) output.
    ce = pl.pallas_call(
        _ce_kernel,
        out_shape=jax.ShapeDtypeStruct((M, N), jnp.float32),
        grid=(pl.cdiv(N, tile_n),),
        in_specs=[
            pl.BlockSpec((M, C, tile_n), lambda j: (0, 0, j)),
            pl.BlockSpec((1, tile_n), lambda j: (0, j)),
        ],
        out_specs=pl.BlockSpec((M, tile_n), lambda j: (0, j)),
        compiler_params=pltpu.CompilerParams(
            dimension_semantics=("parallel",),
            vmem_limit_bytes=vmem_limit),
    )(logits_mcn, tgt2d)
    return ce


def coteaching_loss(ys, target, remember_rate, wgt=1.0):
    """JAX/Pallas equivalent of CoteachingLoss.forward.

    ys: list of (N, C) float logits; target: (N,) int labels;
    remember_rate: static Python scalar (the torch reference concretizes it via
    int(...), so it cannot be traced anyway).
    Returns a list of scalar losses (one per model).
    """
    M = len(ys)
    target = jnp.asarray(target, jnp.int32)
    N = target.shape[0]

    # Build the (M, C, N) kernel layout directly in the stack: the transpose is
    # fused into the copy the stack already makes -> one HBM pass, not two.
    logits_mcn = jnp.stack([jnp.transpose(jnp.asarray(y)) for y in ys], axis=0)

    # 1) per-sample CE for all M models in ONE Pallas call (M folded into block)
    ces = per_sample_ce(logits_mcn, target)                       # (M, N) f32

    # 2) sample selection (fully traced; works under jax.jit).
    # TODO(synk): argsort/top-k selection has no clean Pallas TPU equivalent;
    # it stays as an XLA sort in plain JAX.
    #
    # num = floor(count(target!=0) + count(target==0) * remember_rate).
    # Split the (float64, host-side) remember_rate into hi/lo float32 parts so
    # the traced product keeps ~48 bits of precision before flooring -- the
    # counts themselves are exact in f32, so this matches the float64 reference
    # at the floor boundary without requiring jax x64.
    rr = float(remember_rate)
    rr_hi = np.float32(rr)
    rr_lo = np.float32(rr - float(rr_hi))
    count1 = jnp.sum(target != 0).astype(jnp.int32)
    c0 = jnp.sum(target == 0).astype(jnp.float32)
    num = count1 + jnp.floor(c0 * rr_hi + c0 * rr_lo).astype(jnp.int32)

    masked = jnp.where(target[None, :] != 0, 0.0, ces)            # ls[target != 0] = 0
    order = jnp.argsort(masked, axis=1, stable=True)              # stable ascending
    # rank = inverse permutation of order (single sort + scatter, no 2nd sort)
    rows = jnp.arange(M, dtype=jnp.int32)[:, None]
    cols = jnp.broadcast_to(jnp.arange(N, dtype=jnp.int32)[None, :], (M, N))
    rank = jnp.zeros((M, N), jnp.int32).at[rows, order].set(cols)
    sel = (rank < num).astype(ces.dtype)                          # selection masks

    # co-teaching rotation: model i trains on model (i-1)'s selection
    sel = jnp.roll(sel, shift=1, axis=0)

    # 3) loss_i = wgt * sum of CE_i over selected samples (fused XLA reduction)
    losses = jnp.float32(wgt) * jnp.sum(ces * sel, axis=1)
    return [losses[i] for i in range(M)]


# --------------------------- numpy reference -------------------------------- #

def _ce_np(y, t):
    m = y.max(-1, keepdims=True)
    lse = m[:, 0] + np.log(np.exp(y - m).sum(-1))
    return lse - y[np.arange(y.shape[0]), t]


def coteaching_loss_ref(ys, target, remember_rate, wgt=1.0):
    ys = [np.asarray(y, np.float64) for y in ys]
    target = np.asarray(target)
    M = len(ys)
    idxes = []
    for i in range(M):
        ls = _ce_np(ys[i], target)
        ls[target != 0] = 0.0
        idxes.append(np.argsort(ls, kind="stable"))
    num = int((target != 0).sum() + (target == 0).sum() * remember_rate)
    idxes = idxes[-1:] + idxes[:-1]
    losses = []
    for i in range(M):
        idx = idxes[i][:num]
        y = ys[i][idx]
        t = target[idx]
        losses.append(float((_ce_np(y, t) * wgt).sum()))
    return losses


# --------------------------------- main ------------------------------------- #

if __name__ == "__main__":
    key = jax.random.PRNGKey(0)
    M, N, C = 2, 16, 8          # 2 co-taught models, batch 16, 8 classes
    k_logits, k_tgt = jax.random.split(key)

    ys = [jax.random.normal(jax.random.fold_in(k_logits, i), (N, C), jnp.float32)
          for i in range(M)]
    # labels in [0, 4) so a decent fraction are the "noisy" class 0
    target = jax.random.randint(k_tgt, (N,), 0, 4, jnp.int32)
    remember_rate = 0.75        # exactly representable -> no floor-boundary ambiguity
    wgt = 0.5

    losses = coteaching_loss(ys, target, remember_rate, wgt=wgt)
    losses = [jax.block_until_ready(l) for l in losses]

    ref = coteaching_loss_ref([np.asarray(y) for y in ys], np.asarray(target),
                              remember_rate, wgt)
    for got, want in zip(losses, ref):
        assert abs(float(got) - want) < 1e-3, (float(got), want)

    print("KERNEL_OK")
</pallas_src>

<mosaic_0001>
module attributes {stable_mosaic.version = 11 : i64} {
  func.func @_ce_kernel(%arg0: i32, %arg1: memref<2x8x16xf32, #tpu.memory_space<vmem>>, %arg2: memref<1x16xi32, #tpu.memory_space<vmem>>, %arg3: memref<2x16xf32, #tpu.memory_space<vmem>>) attributes {dimension_semantics = [#tpu.dimension_semantics<parallel>], iteration_bounds = array<i64: 1>, scalar_prefetch = 0 : i64, scratch_operands = 0 : i64, tpu.core_type = #tpu.core_type<tc>, window_params = [{transform_indices = @transform_0, window_bounds = array<i64: 2, 8, 16>}, {transform_indices = @transform_1, window_bounds = array<i64: 1, 16>}, {transform_indices = @transform_2, window_bounds = array<i64: 2, 16>}]} {
    %c0 = arith.constant 0 : index
    %c0_0 = arith.constant 0 : index
    %c0_1 = arith.constant 0 : index
    %0 = vector.load %arg1[%c0, %c0_0, %c0_1] : memref<2x8x16xf32, #tpu.memory_space<vmem>>, vector<2x8x16xf32>
    %c0_2 = arith.constant 0 : index
    %c0_3 = arith.constant 0 : index
    %1 = vector.load %arg2[%c0_2, %c0_3] : memref<1x16xi32, #tpu.memory_space<vmem>>, vector<1x16xi32>
    %2 = tpu.iota {dimensions = array<i32: 1>} : vector<2x8x16xi32>
    %cst = arith.constant dense<0xFF800000> : vector<2x16xf32>
    %3 = vector.multi_reduction <maximumf>, %0, %cst [1] : vector<2x8x16xf32> to vector<2x16xf32>
    %4 = vector.shape_cast %3 : vector<2x16xf32> to vector<2x1x16xf32>
    %5 = vector.broadcast %4 : vector<2x1x16xf32> to vector<2x8x16xf32>
    %6 = arith.subf %0, %5 : vector<2x8x16xf32>
    %7 = math.exp %6 : vector<2x8x16xf32>
    %cst_4 = arith.constant dense<0.000000e+00> : vector<2x16xf32>
    %8 = vector.multi_reduction <add>, %7, %cst_4 [1] : vector<2x8x16xf32> to vector<2x16xf32>
    %9 = vector.shape_cast %8 : vector<2x16xf32> to vector<2x1x16xf32>
    %10 = math.log %9 : vector<2x1x16xf32>
    %11 = arith.addf %4, %10 : vector<2x1x16xf32>
    %12 = vector.shape_cast %1 : vector<1x16xi32> to vector<1x1x16xi32>
    %13 = vector.broadcast %12 : vector<1x1x16xi32> to vector<2x8x16xi32>
    %14 = arith.cmpi eq, %2, %13 : vector<2x8x16xi32>
    %cst_5 = arith.constant 0.000000e+00 : f32
    %15 = vector.broadcast %cst_5 : f32 to vector<2x8x16xf32>
    %16 = arith.select %14, %0, %15 : vector<2x8x16xi1>, vector<2x8x16xf32>
    %cst_6 = arith.constant dense<0.000000e+00> : vector<2x16xf32>
    %17 = vector.multi_reduction <add>, %16, %cst_6 [1] : vector<2x8x16xf32> to vector<2x16xf32>
    %18 = vector.shape_cast %17 : vector<2x16xf32> to vector<2x1x16xf32>
    %19 = arith.subf %11, %18 : vector<2x1x16xf32>
    %20 = vector.shape_cast %19 : vector<2x1x16xf32> to vector<2x16xf32>
    %c0_7 = arith.constant 0 : index
    %c0_8 = arith.constant 0 : index
    %21 = vector.load %arg3[%c0_7, %c0_8] : memref<2x16xf32, #tpu.memory_space<vmem>>, vector<2x16xf32>
    tpu.vector_store %arg3[%c0_7, %c0_8], %20 {strides = array<i32>} : memref<2x16xf32, #tpu.memory_space<vmem>>, vector<2x16xf32>,
    return
  }
  func.func @transform_0(%arg0: i32) -> (i32, i32, i32) {
    %c0_i32 = arith.constant 0 : i32
    %c0_i32_0 = arith.constant 0 : i32
    %c0_i32_1 = arith.constant 0 : i32
    return %c0_i32, %c0_i32_0, %arg0 : i32, i32, i32
  }
  func.func @transform_1(%arg0: i32) -> (i32, i32) {
    %c0_i32 = arith.constant 0 : i32
    %c0_i32_0 = arith.constant 0 : i32
    return %c0_i32, %arg0 : i32, i32
  }
  func.func @transform_2(%arg0: i32) -> (i32, i32) {
    %c0_i32 = arith.constant 0 : i32
    %c0_i32_0 = arith.constant 0 : i32
    return %c0_i32, %arg0 : i32, i32
  }
}

</mosaic_0001>

<llo_original>
// kernel: tpu_custom_call.1
$region0: #{tpu_custom_call.1}
  #allocation0 [shape = 'u32[]', space=smem, size = 0x4, offset = 0x4, fixed_abs, tag = 'smem constant byte address 0x4 - core index']
  #allocation1 [shape = 'u32[144,128]{1,0:T(1,128)}', space=vmem, size = 0x12000, scoped, tag = 'internal scratch']
  %s0 = inlined_call_operand.hbm [shape: f32[2,8,16], index: 0, kind: input, shape index: {}]
  %s1 = inlined_call_operand.vmem [shape: s32[1,16], index: 1, kind: input, shape index: {}]
  %s2 = inlined_call_operand.hbm [shape: f32[2,16], index: 2, kind: output, shape index: {}]
  %s3 = sld [smem:[#allocation0]]
  $region22: #{tpu_custom_call.1} parent=0
    _
  %s5 = ssub.s32 1, %s3
  %s6 = scalar_select 0, %s5, %s3
  $region1: #{tpu_custom_call.1} parent=0
    #allocation2 [shape = 'u8[8192]{0}', space=vmem, size = 0x2000, scoped, tag = 'input window, operand 0, single buffered']
    #allocation3 [shape = 's32[1]{0}', space=sflag, size = 0x4, scoped, tag = 'scoped memory for tpu_custom_call.1']
    #allocation4 [shape = 's32[1]{0}', space=sflag, size = 0x4, scoped, tag = 'scoped memory for tpu_custom_call.1']
    #allocation5 [shape = 'u8[1024]{0}', space=vmem, size = 0x400, scoped, tag = 'output window, operand 0, single buffered']
    %7 = vsyncpa [#allocation3], 0
    %8 = vsyncpa [#allocation4], 0
    // Predicated region
    $region2: #{tpu_custom_call.1} parent=1 // pred_check
      _
    $region3: #{tpu_custom_call.1} parent=1 // pred_check_branch
      %10 = sbr.rel (0) target = $region5
    $region4: #{tpu_custom_call.1} parent=1 // pred_region
      %s12 = ssub.s32 256, 256
      %13 = vsyncadd [#allocation3], %s12
      %s14 = sshll.u32 [#allocation2], 4
      %s15 = int_to_ptr.vmem [resolvable:$true] %s14
      %20 = dma.hbm_to_vmem [thread:$0]  %s0, 256, %s15, [#allocation3], 128, 128, 8
    $region5: #{tpu_custom_call.1} parent=1 // pred_fallthru
      _
    // Predicated region
    $region6: #{tpu_custom_call.1} parent=1 // pred_check
      _
    $region7: #{tpu_custom_call.1} parent=1 // pred_check_branch
      %22 = sbr.rel (0) target = $region9
    $region8: #{tpu_custom_call.1} parent=1 // pred_region
      _
    $region9: #{tpu_custom_call.1} parent=1 // pred_fallthru
      _
    // Predicated region
    $region10: #{tpu_custom_call.1} parent=1 // pred_check
      _
    $region11: #{tpu_custom_call.1} parent=1 // pred_check_branch
      %24 = sbr.rel (0) target = $region13
    $region12: #{tpu_custom_call.1} parent=1 // pred_region
      %25 = dma.done [#allocation3], 256
    $region13: #{tpu_custom_call.1} parent=1 // pred_fallthru
      _
    %v26 = vld [vmem:[#allocation2] sm:$0xff]
    %v27 = vld [vmem:[#allocation2 + $0x8] sm:$0xff]
    %v28 = vld [vmem:[%s1] sm:$0x1]
    %v29 = vlaneseq
    %v30 = vshrl.u32 %v29, 7
    %vm31 = vcmask 130048
    %v32 = vsel %vm31, %v26, -inf
    %v33 = vrot.slane %v32, 4
    %v34 = vmax.f32 %v32, %v33
    %v35 = vrot.slane %v34, 2
    %v36 = vmax.f32 %v34, %v35
    %v37 = vrot.slane %v36, 1
    %v38 = vmax.f32 %v36, %v37
    %v39 = vsel %vm31, %v27, -inf
    %v40 = vrot.slane %v39, 4
    %v41 = vmax.f32 %v39, %v40
    %v42 = vrot.slane %v41, 2
    %v43 = vmax.f32 %v41, %v42
    %v44 = vrot.slane %v43, 1
    %v45 = vmax.f32 %v43, %v44
    %v46 = vsub.f32 %v26, %v38
    %v47 = vsub.f32 %v27, %v45
    %v48 = vmul.f32 %v46, 1.442695
    %v49 = vpow.pop %v48
    %v50 = vmul.f32 %v47, 1.442695
    %v51 = vpow.pop %v50
    %v52 = vsel %vm31, %v49, 0.0
    %v53 = vrot.slane %v52, 4
    %v54 = vadd.f32 %v52, %v53
    %v55 = vrot.slane %v54, 2
    %v56 = vadd.f32 %v54, %v55
    %v57 = vrot.slane %v56, 1
    %v58 = vadd.f32 %v56, %v57
    %v59 = vsel %vm31, %v51, 0.0
    %v60 = vrot.slane %v59, 4
    %v61 = vadd.f32 %v59, %v60
    %v62 = vrot.slane %v61, 2
    %v63 = vadd.f32 %v61, %v62
    %v64 = vrot.slane %v63, 1
    %v65 = vadd.f32 %v63, %v64
    %v66 = vlog2.pop %v58
    %v67 = vmul.f32 %v66, 0.6931472
    %v68 = vlog2.pop %v65
    %v69 = vmul.f32 %v68, 0.6931472
    %v70 = vadd.f32 %v38, %v67
    %v71 = vadd.f32 %v45, %v69
    %v72 = vlaneseq
    %v73 = vshrl.u32 %v72, 7
    %v74 = vsub.s32 0, %v73
    %v75 = vrot.slane %v28, %v74
    %vm76 = vcmp.eq.s32.totalorder %v30, %v75
    %v77 = vsel %vm76, %v26, 0.0
    %v78 = vsel %vm76, %v27, 0.0
    %v79 = vsel %vm31, %v77, 0.0
    %v80 = vrot.slane %v79, 4
    %v81 = vadd.f32 %v79, %v80
    %v82 = vrot.slane %v81, 2
    %v83 = vadd.f32 %v81, %v82
    %v84 = vrot.slane %v83, 1
    %v85 = vadd.f32 %v83, %v84
    %v86 = vsel %vm31, %v78, 0.0
    %v87 = vrot.slane %v86, 4
    %v88 = vadd.f32 %v86, %v87
    %v89 = vrot.slane %v88, 2
    %v90 = vadd.f32 %v88, %v89
    %v91 = vrot.slane %v90, 1
    %v92 = vadd.f32 %v90, %v91
    %v93 = vsub.f32 %v70, %v85
    %v94 = vsub.f32 %v71, %v92
    %vm97 = vcmask 1041409
    %v98 = vsel %vm97, %v94, %v93
    %vm100 = vcmask 123904
    %101 = vst.msk [vmem:[#allocation5] sm:$0x3] %vm100, %v98
    // Predicated region
    $region14: #{tpu_custom_call.1} parent=1 // pred_check
      _
    $region15: #{tpu_custom_call.1} parent=1 // pred_check_branch
      %103 = sbr.rel (0) target = $region17
    $region16: #{tpu_custom_call.1} parent=1 // pred_region
      %s105 = ssub.s32 32, 32
      %106 = vsyncadd [#allocation4], %s105
      %s108 = sshll.u32 [#allocation5], 4
      %s109 = int_to_ptr.vmem [resolvable:$true] %s108
      %111 = dma.vmem_to_hbm [thread:$0]  %s109, 32, %s2, [#allocation4]
    $region17: #{tpu_custom_call.1} parent=1 // pred_fallthru
      _
    // Predicated region
    $region18: #{tpu_custom_call.1} parent=1 // pred_check
      _
    $region19: #{tpu_custom_call.1} parent=1 // pred_check_branch
      %113 = sbr.rel (0) target = $region21
    $region20: #{tpu_custom_call.1} parent=1 // pred_region
      %114 = dma.done [#allocation4], 32
    $region21: #{tpu_custom_call.1} parent=1 // pred_fallthru
      _
    %115 = vsyncpa [#allocation3], 1
    %116 = vsyncpa [#allocation4], 1

</llo_original>
